<compile_context>
chip_gen: v7x
topology: tpu7x:2x2x1
jax: 0.10.0
libtpu: 0.0.40
codegen_flags: <defaults>
</compile_context>

<pallas_src>
import math
import numpy as np
import jax
import jax.numpy as jnp
from jax import lax
from jax.experimental import pallas as pl
from jax.experimental.pallas import tpu as pltpu


def _cdiv(a, b):
    return -(-a // b)


def _pick_pack_factor(half, HW):
    """Smallest R with HW % R == 0 and (R*half) % 128 == 0 (lane-dense, unmasked
    stores); fall back to the smallest divisor of HW with R*half >= 128, then
    to the whole (h, w) plane."""
    r = 128 // math.gcd(half, 128)
    if HW % r == 0:
        return r
    for cand in range(1, HW + 1):
        if HW % cand == 0 and cand * half >= 128:
            return cand
    return HW


# ----------------------------------------------------------------------------
# Pallas kernel: assemble TF frames of the cos and sin tables in one grid step.
#   cos[f, hw, :] = t_cos_row[f] + hw_cos_row[hw]   (and same for sin)
# with zero-padded column layouts so a single broadcast add per frame suffices.
# ----------------------------------------------------------------------------
def _make_assemble_kernel(TF):
    def kernel(tc_ref, ts_ref, hwc_ref, hws_ref, cos_ref, sin_ref):
        # tc/ts : (F_pad, 1, Wc) per-frame [cos_t|0] / [sin_t|0] rows, resident.
        # hwc/hws: (THW, Wc)     [0|cos_h cos_w] / [0|sin_h sin_w] rows (f-invariant).
        # cos/sin: (TF, THW, Wc) output blocks (TF frames fused per grid step).
        f0 = pl.multiple_of(pl.program_id(1) * TF, TF)
        hw_cos = hwc_ref[...]
        hw_sin = hws_ref[...]
        for r in range(TF):                      # static unroll, TF <= 8
            cos_ref[r] = hw_cos + tc_ref[f0 + r]
            sin_ref[r] = hw_sin + ts_ref[f0 + r]
    return kernel


class RotaryPosEmbed:
    def __init__(self, attention_head_dim, patch_size, max_seq_len, theta=10000.0):
        self.attention_head_dim = attention_head_dim
        self.patch_size = patch_size
        self.max_seq_len = max_seq_len
        self.theta = theta

        h_dim = w_dim = 2 * (attention_head_dim // 6)
        t_dim = attention_head_dim - h_dim - w_dim
        self.t_half = t_dim // 2
        self.h_half = h_dim // 2
        self.w_half = w_dim // 2
        self.half = attention_head_dim // 2

        def inv_freq(dim):
            return 1.0 / (theta ** (np.arange(0, dim, 2, dtype=np.float64)[: dim // 2] / dim))

        self.inv_t = inv_freq(t_dim)
        self.inv_h = inv_freq(h_dim)
        self.inv_w = inv_freq(w_dim)

        # Per-axis cos/sin tables computed once on the host in float64 (like torch
        # building the complex128 table in __init__), cast to f32 at use.
        # TODO(synk): TPU has no f64/complex128; tables are carried as float32.
        pos = np.arange(max_seq_len, dtype=np.float64)[:, None]
        self.cos_t, self.sin_t = np.cos(pos * self.inv_t), np.sin(pos * self.inv_t)
        self.cos_h, self.sin_h = np.cos(pos * self.inv_h), np.sin(pos * self.inv_h)
        self.cos_w, self.sin_w = np.cos(pos * self.inv_w), np.sin(pos * self.inv_w)

        self._cos_sin_cache = {}
        self._freqs_cache = {}

    # ------------------------------------------------------------------
    def _build_cos_sin(self, ppf, pph, ppw):
        half, t_half = self.half, self.t_half
        hw_half = self.h_half + self.w_half
        HW = pph * ppw
        S = ppf * HW

        # Lane packing: R consecutive (h, w) positions per kernel row so the
        # output last dim R*half is a multiple of 128 (unmasked full-width vst).
        R = _pick_pack_factor(half, HW)
        Wc = R * half
        HWp = HW // R

        # --- Tiling sized for v5e (16 MiB scoped dflt) / v6e / v7x (64 MiB) ---
        row_bytes = Wc * 4
        budget_rows = max(8, (512 * 1024) // row_bytes)          # ~512 KiB hw tile
        THW = HWp if HWp <= budget_rows else max(8, (budget_rows // 8) * 8)
        n_hw = _cdiv(HWp, THW)
        TF = min(ppf, 8)                                         # fused frames / step
        while TF > 1 and TF * THW * row_bytes > (4 << 20):       # <=4 MiB per out buf
            TF -= 1
        if n_hw == 1 and ppf > 1 and _cdiv(ppf, TF) < 2:
            TF = _cdiv(ppf, 2)                                   # >=2 blocks (megacore)
        n_f = _cdiv(ppf, TF)
        F_pad = n_f * TF                                         # pad t so in-kernel
                                                                 # slices stay in-bounds

        # --- Host-side (float64) table assembly, cast to float32 --------------
        zt = np.zeros((ppf, hw_half), np.float64)
        t_cos = np.tile(np.concatenate([self.cos_t[:ppf], zt], axis=1), (1, R))
        t_sin = np.tile(np.concatenate([self.sin_t[:ppf], zt], axis=1), (1, R))
        t_cos = np.pad(t_cos.astype(np.float32), ((0, F_pad - ppf), (0, 0)))
        t_sin = np.pad(t_sin.astype(np.float32), ((0, F_pad - ppf), (0, 0)))
        t_cos = jnp.asarray(t_cos.reshape(F_pad, 1, Wc))
        t_sin = jnp.asarray(t_sin.reshape(F_pad, 1, Wc))

        zhw = np.zeros((pph, ppw, t_half), np.float64)
        bh = lambda a: np.broadcast_to(a[:pph][:, None, :], (pph, ppw, a.shape[-1]))
        bw = lambda a: np.broadcast_to(a[:ppw][None, :, :], (pph, ppw, a.shape[-1]))
        hw_cos = np.concatenate([zhw, bh(self.cos_h), bw(self.cos_w)], axis=-1)
        hw_sin = np.concatenate([zhw, bh(self.sin_h), bw(self.sin_w)], axis=-1)
        hw_cos = jnp.asarray(hw_cos.astype(np.float32).reshape(HWp, Wc))
        hw_sin = jnp.asarray(hw_sin.astype(np.float32).reshape(HWp, Wc))

        cost = pl.CostEstimate(
            flops=2 * S * half,                 # one add per output element
            transcendentals=0,                  # trig precomputed on host
            bytes_accessed=4 * (2 * F_pad * Wc + 2 * HWp * Wc + 2 * ppf * HWp * Wc),
        )

        cos3, sin3 = pl.pallas_call(
            _make_assemble_kernel(TF),
            out_shape=(jax.ShapeDtypeStruct((ppf, HWp, Wc), jnp.float32),
                       jax.ShapeDtypeStruct((ppf, HWp, Wc), jnp.float32)),
            grid=(n_hw, n_f),                   # f innermost: hw tile stays resident
            in_specs=[
                pl.BlockSpec((F_pad, 1, Wc), lambda j, f: (0, 0, 0)),  # t cos (resident)
                pl.BlockSpec((F_pad, 1, Wc), lambda j, f: (0, 0, 0)),  # t sin (resident)
                pl.BlockSpec((THW, Wc), lambda j, f: (j, 0)),          # hw cos tile
                pl.BlockSpec((THW, Wc), lambda j, f: (j, 0)),          # hw sin tile
            ],
            out_specs=(
                pl.BlockSpec((TF, THW, Wc), lambda j, f: (f, j, 0)),
                pl.BlockSpec((TF, THW, Wc), lambda j, f: (f, j, 0)),
            ),
            compiler_params=pltpu.CompilerParams(
                dimension_semantics=("parallel", "parallel"),
                vmem_limit_bytes=32 * 1024 * 1024),
            cost_estimate=cost,
        )(t_cos, t_sin, hw_cos, hw_sin)

        # (ppf, HWp, R*half) is contiguous with (S, half): free reshapes, no
        # strided slicing and no extra HBM pass.
        cos = cos3.reshape(1, 1, S, half)
        sin = sin3.reshape(1, 1, S, half)
        return cos, sin

    # ------------------------------------------------------------------
    def _key(self, hidden_states):
        _, _, num_frames, height, width = hidden_states.shape
        p_t, p_h, p_w = self.patch_size
        return (num_frames // p_t, height // p_h, width // p_w)

    def cos_sin(self, hidden_states):
        """Preferred consumption path: (cos, sin), each (1, 1, S, head_dim//2) f32."""
        key = self._key(hidden_states)
        if key not in self._cos_sin_cache:
            self._cos_sin_cache[key] = self._build_cos_sin(*key)
        return self._cos_sin_cache[key]

    def __call__(self, hidden_states):
        key = self._key(hidden_states)
        if key not in self._freqs_cache:
            cos, sin = self.cos_sin(hidden_states)
            # TODO(synk): downstream should consume (cos, sin) directly and apply
            # RoPE with real arithmetic; complex64 is built (once, cached) only to
            # match the PyTorch module's output contract.
            self._freqs_cache[key] = lax.complex(cos, sin)
        return self._freqs_cache[key]


# ----------------------------------------------------------------------------
# Pure-numpy reference mirroring the PyTorch forward (complex128 tables +
# expand + concat + reshape), used to validate the kernel output.
# ----------------------------------------------------------------------------
def _reference(module, hidden_shape):
    _, _, F, H, W = hidden_shape
    p_t, p_h, p_w = module.patch_size
    ppf, pph, ppw = F // p_t, H // p_h, W // p_w

    def table(inv, n):
        pos = np.arange(n, dtype=np.float64)[:, None]
        return np.exp(1j * pos * inv[None, :])

    ft = table(module.inv_t, ppf)
    fh = table(module.inv_h, pph)
    fw = table(module.inv_w, ppw)
    ft_e = np.broadcast_to(ft[:, None, None, :], (ppf, pph, ppw, ft.shape[1]))
    fh_e = np.broadcast_to(fh[None, :, None, :], (ppf, pph, ppw, fh.shape[1]))
    fw_e = np.broadcast_to(fw[None, None, :, :], (ppf, pph, ppw, fw.shape[1]))
    out = np.concatenate([ft_e, fh_e, fw_e], axis=-1)
    return out.reshape(1, 1, ppf * pph * ppw, -1)


if __name__ == "__main__":
    key = jax.random.PRNGKey(0)

    # Config 1: head_dim=64 (half=32, R=4 -> lane width 128), B=2, C=4, F=8, H=W=16.
    hidden_states = jax.random.normal(key, (2, 4, 8, 16, 16), dtype=jnp.float32)
    module = RotaryPosEmbed(attention_head_dim=64, patch_size=(1, 2, 2),
                            max_seq_len=32, theta=10000.0)
    freqs = jax.block_until_ready(module(hidden_states))
    assert freqs.shape == (1, 1, 8 * 8 * 8, 32), freqs.shape
    assert freqs.dtype == jnp.complex64, freqs.dtype
    ref = _reference(module, hidden_states.shape)
    np.testing.assert_allclose(np.asarray(freqs), ref.astype(np.complex64),
                               rtol=1e-6, atol=1e-6)
    # Cached hot path returns the same (already materialized) table.
    assert module(hidden_states) is freqs

    # Config 2: head_dim=96 (t_half != h_half, half=48, R=8 -> lane width 384).
    hidden_states2 = jax.random.normal(key, (2, 4, 4, 8, 8), dtype=jnp.float32)
    module2 = RotaryPosEmbed(attention_head_dim=96, patch_size=(1, 2, 2),
                             max_seq_len=16, theta=10000.0)
    freqs2 = jax.block_until_ready(module2(hidden_states2))
    ref2 = _reference(module2, hidden_states2.shape)
    assert freqs2.shape == ref2.shape, (freqs2.shape, ref2.shape)
    np.testing.assert_allclose(np.asarray(freqs2), ref2.astype(np.complex64),
                               rtol=1e-6, atol=1e-6)

    print("KERNEL_OK")
</pallas_src>

<mosaic_0001>
module attributes {stable_mosaic.version = 11 : i64} {
  func.func @kernel(%arg0: i32, %arg1: i32, %arg2: memref<8x1x128xf32, #tpu.memory_space<vmem>>, %arg3: memref<8x1x128xf32, #tpu.memory_space<vmem>>, %arg4: memref<16x128xf32, #tpu.memory_space<vmem>>, %arg5: memref<16x128xf32, #tpu.memory_space<vmem>>, %arg6: memref<4x16x128xf32, #tpu.memory_space<vmem>>, %arg7: memref<4x16x128xf32, #tpu.memory_space<vmem>>) attributes {dimension_semantics = [#tpu.dimension_semantics<parallel>, #tpu.dimension_semantics<parallel>], iteration_bounds = array<i64: 1, 2>, scalar_prefetch = 0 : i64, scratch_operands = 0 : i64, tpu.core_type = #tpu.core_type<tc>, window_params = [{pipeline_mode = #tpu.pipeline_mode<synchronous>, transform_indices = @transform_0, window_bounds = array<i64: 8, 1, 128>}, {pipeline_mode = #tpu.pipeline_mode<synchronous>, transform_indices = @transform_1, window_bounds = array<i64: 8, 1, 128>}, {transform_indices = @transform_2, window_bounds = array<i64: 16, 128>}, {transform_indices = @transform_3, window_bounds = array<i64: 16, 128>}, {transform_indices = @transform_4, window_bounds = array<i64: 4, 16, 128>}, {transform_indices = @transform_5, window_bounds = array<i64: 4, 16, 128>}]} {
    %c4_i32 = arith.constant 4 : i32
    %0 = arith.muli %arg1, %c4_i32 : i32
    %1 = tpu.assume_multiple %0, 4 : i32
    %c0 = arith.constant 0 : index
    %c0_0 = arith.constant 0 : index
    %2 = vector.load %arg4[%c0, %c0_0] : memref<16x128xf32, #tpu.memory_space<vmem>>, vector<16x128xf32>
    %c0_1 = arith.constant 0 : index
    %c0_2 = arith.constant 0 : index
    %3 = vector.load %arg5[%c0_1, %c0_2] : memref<16x128xf32, #tpu.memory_space<vmem>>, vector<16x128xf32>
    %c0_i32 = arith.constant 0 : i32
    %4 = arith.addi %1, %c0_i32 : i32
    %5 = arith.index_cast %4 : i32 to index
    %c0_3 = arith.constant 0 : index
    %c0_4 = arith.constant 0 : index
    %6 = vector.load %arg2[%5, %c0_3, %c0_4] : memref<8x1x128xf32, #tpu.memory_space<vmem>>, vector<1x1x128xf32>
    %7 = vector.shape_cast %6 : vector<1x1x128xf32> to vector<1x128xf32>
    %8 = vector.broadcast %7 : vector<1x128xf32> to vector<16x128xf32>
    %9 = arith.addf %2, %8 : vector<16x128xf32>
    %c0_5 = arith.constant 0 : index
    %c0_6 = arith.constant 0 : index
    %c0_7 = arith.constant 0 : index
    %10 = vector.load %arg6[%c0_5, %c0_6, %c0_7] : memref<4x16x128xf32, #tpu.memory_space<vmem>>, vector<1x16x128xf32>
    %11 = vector.shape_cast %10 : vector<1x16x128xf32> to vector<16x128xf32>
    %12 = vector.shape_cast %9 : vector<16x128xf32> to vector<1x16x128xf32>
    tpu.vector_store %arg6[%c0_5, %c0_6, %c0_7], %12 {strides = array<i32>} : memref<4x16x128xf32, #tpu.memory_space<vmem>>, vector<1x16x128xf32>,
    %c0_i32_8 = arith.constant 0 : i32
    %13 = arith.addi %1, %c0_i32_8 : i32
    %14 = arith.index_cast %13 : i32 to index
    %c0_9 = arith.constant 0 : index
    %c0_10 = arith.constant 0 : index
    %15 = vector.load %arg3[%14, %c0_9, %c0_10] : memref<8x1x128xf32, #tpu.memory_space<vmem>>, vector<1x1x128xf32>
    %16 = vector.shape_cast %15 : vector<1x1x128xf32> to vector<1x128xf32>
    %17 = vector.broadcast %16 : vector<1x128xf32> to vector<16x128xf32>
    %18 = arith.addf %3, %17 : vector<16x128xf32>
    %c0_11 = arith.constant 0 : index
    %c0_12 = arith.constant 0 : index
    %c0_13 = arith.constant 0 : index
    %19 = vector.load %arg7[%c0_11, %c0_12, %c0_13] : memref<4x16x128xf32, #tpu.memory_space<vmem>>, vector<1x16x128xf32>
    %20 = vector.shape_cast %19 : vector<1x16x128xf32> to vector<16x128xf32>
    %21 = vector.shape_cast %18 : vector<16x128xf32> to vector<1x16x128xf32>
    tpu.vector_store %arg7[%c0_11, %c0_12, %c0_13], %21 {strides = array<i32>} : memref<4x16x128xf32, #tpu.memory_space<vmem>>, vector<1x16x128xf32>,
    %c1_i32 = arith.constant 1 : i32
    %22 = arith.addi %1, %c1_i32 : i32
    %23 = arith.index_cast %22 : i32 to index
    %c0_14 = arith.constant 0 : index
    %c0_15 = arith.constant 0 : index
    %24 = vector.load %arg2[%23, %c0_14, %c0_15] : memref<8x1x128xf32, #tpu.memory_space<vmem>>, vector<1x1x128xf32>
    %25 = vector.shape_cast %24 : vector<1x1x128xf32> to vector<1x128xf32>
    %26 = vector.broadcast %25 : vector<1x128xf32> to vector<16x128xf32>
    %27 = arith.addf %2, %26 : vector<16x128xf32>
    %c1 = arith.constant 1 : index
    %c0_16 = arith.constant 0 : index
    %c0_17 = arith.constant 0 : index
    %28 = vector.load %arg6[%c1, %c0_16, %c0_17] : memref<4x16x128xf32, #tpu.memory_space<vmem>>, vector<1x16x128xf32>
    %29 = vector.shape_cast %28 : vector<1x16x128xf32> to vector<16x128xf32>
    %30 = vector.shape_cast %27 : vector<16x128xf32> to vector<1x16x128xf32>
    tpu.vector_store %arg6[%c1, %c0_16, %c0_17], %30 {strides = array<i32>} : memref<4x16x128xf32, #tpu.memory_space<vmem>>, vector<1x16x128xf32>,
    %c1_i32_18 = arith.constant 1 : i32
    %31 = arith.addi %1, %c1_i32_18 : i32
    %32 = arith.index_cast %31 : i32 to index
    %c0_19 = arith.constant 0 : index
    %c0_20 = arith.constant 0 : index
    %33 = vector.load %arg3[%32, %c0_19, %c0_20] : memref<8x1x128xf32, #tpu.memory_space<vmem>>, vector<1x1x128xf32>
    %34 = vector.shape_cast %33 : vector<1x1x128xf32> to vector<1x128xf32>
    %35 = vector.broadcast %34 : vector<1x128xf32> to vector<16x128xf32>
    %36 = arith.addf %3, %35 : vector<16x128xf32>
    %c1_21 = arith.constant 1 : index
    %c0_22 = arith.constant 0 : index
    %c0_23 = arith.constant 0 : index
    %37 = vector.load %arg7[%c1_21, %c0_22, %c0_23] : memref<4x16x128xf32, #tpu.memory_space<vmem>>, vector<1x16x128xf32>
    %38 = vector.shape_cast %37 : vector<1x16x128xf32> to vector<16x128xf32>
    %39 = vector.shape_cast %36 : vector<16x128xf32> to vector<1x16x128xf32>
    tpu.vector_store %arg7[%c1_21, %c0_22, %c0_23], %39 {strides = array<i32>} : memref<4x16x128xf32, #tpu.memory_space<vmem>>, vector<1x16x128xf32>,
    %c2_i32 = arith.constant 2 : i32
    %40 = arith.addi %1, %c2_i32 : i32
    %41 = arith.index_cast %40 : i32 to index
    %c0_24 = arith.constant 0 : index
    %c0_25 = arith.constant 0 : index
    %42 = vector.load %arg2[%41, %c0_24, %c0_25] : memref<8x1x128xf32, #tpu.memory_space<vmem>>, vector<1x1x128xf32>
    %43 = vector.shape_cast %42 : vector<1x1x128xf32> to vector<1x128xf32>
    %44 = vector.broadcast %43 : vector<1x128xf32> to vector<16x128xf32>
    %45 = arith.addf %2, %44 : vector<16x128xf32>
    %c2 = arith.constant 2 : index
    %c0_26 = arith.constant 0 : index
    %c0_27 = arith.constant 0 : index
    %46 = vector.load %arg6[%c2, %c0_26, %c0_27] : memref<4x16x128xf32, #tpu.memory_space<vmem>>, vector<1x16x128xf32>
    %47 = vector.shape_cast %46 : vector<1x16x128xf32> to vector<16x128xf32>
    %48 = vector.shape_cast %45 : vector<16x128xf32> to vector<1x16x128xf32>
    tpu.vector_store %arg6[%c2, %c0_26, %c0_27], %48 {strides = array<i32>} : memref<4x16x128xf32, #tpu.memory_space<vmem>>, vector<1x16x128xf32>,
    %c2_i32_28 = arith.constant 2 : i32
    %49 = arith.addi %1, %c2_i32_28 : i32
    %50 = arith.index_cast %49 : i32 to index
    %c0_29 = arith.constant 0 : index
    %c0_30 = arith.constant 0 : index
    %51 = vector.load %arg3[%50, %c0_29, %c0_30] : memref<8x1x128xf32, #tpu.memory_space<vmem>>, vector<1x1x128xf32>
    %52 = vector.shape_cast %51 : vector<1x1x128xf32> to vector<1x128xf32>
    %53 = vector.broadcast %52 : vector<1x128xf32> to vector<16x128xf32>
    %54 = arith.addf %3, %53 : vector<16x128xf32>
    %c2_31 = arith.constant 2 : index
    %c0_32 = arith.constant 0 : index
    %c0_33 = arith.constant 0 : index
    %55 = vector.load %arg7[%c2_31, %c0_32, %c0_33] : memref<4x16x128xf32, #tpu.memory_space<vmem>>, vector<1x16x128xf32>
    %56 = vector.shape_cast %55 : vector<1x16x128xf32> to vector<16x128xf32>
    %57 = vector.shape_cast %54 : vector<16x128xf32> to vector<1x16x128xf32>
    tpu.vector_store %arg7[%c2_31, %c0_32, %c0_33], %57 {strides = array<i32>} : memref<4x16x128xf32, #tpu.memory_space<vmem>>, vector<1x16x128xf32>,
    %c3_i32 = arith.constant 3 : i32
    %58 = arith.addi %1, %c3_i32 : i32
    %59 = arith.index_cast %58 : i32 to index
    %c0_34 = arith.constant 0 : index
    %c0_35 = arith.constant 0 : index
    %60 = vector.load %arg2[%59, %c0_34, %c0_35] : memref<8x1x128xf32, #tpu.memory_space<vmem>>, vector<1x1x128xf32>
    %61 = vector.shape_cast %60 : vector<1x1x128xf32> to vector<1x128xf32>
    %62 = vector.broadcast %61 : vector<1x128xf32> to vector<16x128xf32>
    %63 = arith.addf %2, %62 : vector<16x128xf32>
    %c3 = arith.constant 3 : index
    %c0_36 = arith.constant 0 : index
    %c0_37 = arith.constant 0 : index
    %64 = vector.load %arg6[%c3, %c0_36, %c0_37] : memref<4x16x128xf32, #tpu.memory_space<vmem>>, vector<1x16x128xf32>
    %65 = vector.shape_cast %64 : vector<1x16x128xf32> to vector<16x128xf32>
    %66 = vector.shape_cast %63 : vector<16x128xf32> to vector<1x16x128xf32>
    tpu.vector_store %arg6[%c3, %c0_36, %c0_37], %66 {strides = array<i32>} : memref<4x16x128xf32, #tpu.memory_space<vmem>>, vector<1x16x128xf32>,
    %c3_i32_38 = arith.constant 3 : i32
    %67 = arith.addi %1, %c3_i32_38 : i32
    %68 = arith.index_cast %67 : i32 to index
    %c0_39 = arith.constant 0 : index
    %c0_40 = arith.constant 0 : index
    %69 = vector.load %arg3[%68, %c0_39, %c0_40] : memref<8x1x128xf32, #tpu.memory_space<vmem>>, vector<1x1x128xf32>
    %70 = vector.shape_cast %69 : vector<1x1x128xf32> to vector<1x128xf32>
    %71 = vector.broadcast %70 : vector<1x128xf32> to vector<16x128xf32>
    %72 = arith.addf %3, %71 : vector<16x128xf32>
    %c3_41 = arith.constant 3 : index
    %c0_42 = arith.constant 0 : index
    %c0_43 = arith.constant 0 : index
    %73 = vector.load %arg7[%c3_41, %c0_42, %c0_43] : memref<4x16x128xf32, #tpu.memory_space<vmem>>, vector<1x16x128xf32>
    %74 = vector.shape_cast %73 : vector<1x16x128xf32> to vector<16x128xf32>
    %75 = vector.shape_cast %72 : vector<16x128xf32> to vector<1x16x128xf32>
    tpu.vector_store %arg7[%c3_41, %c0_42, %c0_43], %75 {strides = array<i32>} : memref<4x16x128xf32, #tpu.memory_space<vmem>>, vector<1x16x128xf32>,
    return
  }
  func.func @transform_0(%arg0: i32, %arg1: i32) -> (i32, i32, i32) {
    %c0_i32 = arith.constant 0 : i32
    %c0_i32_0 = arith.constant 0 : i32
    %c0_i32_1 = arith.constant 0 : i32
    %c0_i32_2 = arith.constant 0 : i32
    return %c0_i32, %c0_i32_0, %c0_i32_1 : i32, i32, i32
  }
  func.func @transform_1(%arg0: i32, %arg1: i32) -> (i32, i32, i32) {
    %c0_i32 = arith.constant 0 : i32
    %c0_i32_0 = arith.constant 0 : i32
    %c0_i32_1 = arith.constant 0 : i32
    %c0_i32_2 = arith.constant 0 : i32
    return %c0_i32, %c0_i32_0, %c0_i32_1 : i32, i32, i32
  }
  func.func @transform_2(%arg0: i32, %arg1: i32) -> (i32, i32) {
    %c0_i32 = arith.constant 0 : i32
    %c0_i32_0 = arith.constant 0 : i32
    return %arg0, %c0_i32 : i32, i32
  }
  func.func @transform_3(%arg0: i32, %arg1: i32) -> (i32, i32) {
    %c0_i32 = arith.constant 0 : i32
    %c0_i32_0 = arith.constant 0 : i32
    return %arg0, %c0_i32 : i32, i32
  }
  func.func @transform_4(%arg0: i32, %arg1: i32) -> (i32, i32, i32) {
    %c0_i32 = arith.constant 0 : i32
    %c0_i32_0 = arith.constant 0 : i32
    return %arg1, %arg0, %c0_i32 : i32, i32, i32
  }
  func.func @transform_5(%arg0: i32, %arg1: i32) -> (i32, i32, i32) {
    %c0_i32 = arith.constant 0 : i32
    %c0_i32_0 = arith.constant 0 : i32
    return %arg1, %arg0, %c0_i32 : i32, i32, i32
  }
}

</mosaic_0001>

<llo_original>
// kernel: tpu_custom_call.1
$region0: #{tpu_custom_call.1}
  #allocation0 [shape = 'u32[]', space=smem, size = 0x4, offset = 0x4, fixed_abs, tag = 'smem constant byte address 0x4 - core index']
  #allocation1 [shape = 'u32[144,128]{1,0:T(1,128)}', space=vmem, size = 0x12000, scoped, tag = 'internal scratch']
  %s0 = inlined_call_operand.hbm [shape: f32[8,1,128], index: 0, kind: input, shape index: {}]
  %s1 = inlined_call_operand.hbm [shape: f32[8,1,128], index: 1, kind: input, shape index: {}]
  %s2 = inlined_call_operand.hbm [shape: f32[16,128], index: 2, kind: input, shape index: {}]
  %s3 = inlined_call_operand.hbm [shape: f32[16,128], index: 3, kind: input, shape index: {}]
  %s4 = inlined_call_operand.hbm [shape: f32[8,16,128], index: 4, kind: output, shape index: {0}]
  %s5 = inlined_call_operand.hbm [shape: f32[8,16,128], index: 5, kind: output, shape index: {1}]
  %6 = xla_tuple %s4, %s5
  %s7 = sld [smem:[#allocation0]]
  $region73: #{tpu_custom_call.1} parent=0
    _
  %s9 = ssub.s32 1, %s7
  %s10 = scalar_select 0, %s9, %s7
  $region1: #{tpu_custom_call.1} parent=0
    #allocation2 [shape = 'u8[4096]{0}', space=vmem, size = 0x1000, scoped, tag = 'input window, operand 0, single buffered']
    #allocation3 [shape = 's32[2]{0}', space=sflag, size = 0x8, scoped, tag = 'scoped memory for tpu_custom_call.1']
    #allocation4 [shape = 's32[2]{0}', space=sflag, size = 0x8, scoped, tag = 'scoped memory for tpu_custom_call.1']
    #allocation5 [shape = 'u8[4096]{0}', space=vmem, size = 0x1000, scoped, tag = 'input window, operand 1, single buffered']
    #allocation6 [shape = 's32[1]{0}', space=sflag, size = 0x4, scoped, tag = 'scoped memory for tpu_custom_call.1']
    #allocation7 [shape = 'u8[8192]{0}', space=vmem, size = 0x2000, scoped, tag = 'input window, operand 2, single buffered']
    #allocation8 [shape = 'u8[8192]{0}', space=vmem, size = 0x2000, scoped, tag = 'input window, operand 3, single buffered']
    #allocation9 [shape = 's32[1]{0}', space=sflag, size = 0x4, scoped, tag = 'scoped memory for tpu_custom_call.1']
    #allocation10 [shape = 'u8[65536]{0}', space=vmem, size = 0x10000, scoped, tag = 'output window, operand 0']
    #allocation11 [shape = 'u8[65536]{0}', space=vmem, size = 0x10000, scoped, tag = 'output window, operand 1']
    #allocation12 [shape = 's32[2]{0}', space=sflag, size = 0x8, scoped, tag = 'scoped memory for tpu_custom_call.1']
    %11 = vsyncpa [#allocation3], 0
    %12 = vsyncpa [#allocation6], 0
    %13 = vsyncpa [#allocation9], 0
    %14 = vsyncpa [#allocation4], 0
    %s15 = scalar_lea.sflag [#allocation4], 1
    %16 = vsyncpa %s15, 0
    %17 = vsyncpa [#allocation12], 0
    %s18 = scalar_lea.sflag [#allocation12], 1
    %19 = vsyncpa %s18, 0
    loop: start=0, step=1, limit=4
    $region2: #{tpu_custom_call.1} parent=1 // loop_pre_header
      _
    $region3: #{tpu_custom_call.1} parent=1 // loop_header
      %s21 = sphi 0, %s25
      %p22 = scmp.ge.s32.totalorder %s21, 4
      %s28 = sphi 0, %s40
      %s29 = sphi 0, %s36
      %s30 = sphi 0, %s28
      %s31 = sphi 0, %s29
      %s32 = sphi 0, %s30
      %s33 = sphi 0, %s31
      %s41 = sphi 0, %s41
      %s43 = sphi 0, %s41
      %s44 = sphi 0, %s43
      %s58 = sphi 0, %s44
      %s62 = sphi 0, %s62
      %s64 = sphi 0, %s62
      %s65 = sphi 0, %s64
      %s79 = sphi 0, %s65
      %s85 = sphi 0, %s87
      %s88 = sphi 0, %s85
      %s89 = sphi 0, %s88
      %s105 = sphi 0, %s89
      %s111 = sphi 0, %s113
      %s114 = sphi 0, %s111
      %s115 = sphi 0, %s114
      %s131 = sphi 0, %s115
      %s139 = sphi 0, %s141
      %s142 = sphi 0, %s139
      %s143 = sphi 0, %s142
      %s159 = sphi 0, %s143
      %s167 = sphi 0, %s169
      %s170 = sphi 0, %s167
      %s171 = sphi 0, %s170
      %s187 = sphi 0, %s171
    $region4: #{tpu_custom_call.1} parent=1 // loop_header_branch
      %24 = sbr.rel (%p22) target = $region8
    $region5: #{tpu_custom_call.1} parent=1 // loop_body
      %s26 = ssub.s32 %s21, 1
      %s27 = ssub.s32 %s21, 2
      %s34 = sadd.s32 1, %s29
      %p35 = scmp.ge.s32.totalorder %s34, 2
      %s36 = scalar_select %p35, 0, %s34
      %s37 = sadd.s32 1, %s28
      %s38 = scalar_select %p35, %s37, %s28
      %p39 = scmp.ge.s32.totalorder %s38, 1
      %s40 = scalar_select %p39, 0, %s38
      %s42 = sadd.s32 %s41, 1
      %p45 = scmp.eq.s32.totalorder %s21, 1
      %p46 = scmp.ne.s32.totalorder %s41, %s43
      %p47 = scmp.eq.s32.totalorder %s21, 0
      %p48 = por %p46, %p47
      %p49 = scmp.ne.s32.totalorder %s41, %s43
      %p50 = scmp.eq.s32.totalorder %s26, 1
      %p51 = por %p49, %p50
      %p52 = scmp.ne.s32.totalorder %s43, %s44
      %p53 = scmp.eq.s32.totalorder %s26, 0
      %p54 = por %p52, %p53
      %p55 = scmp.ne.s32.totalorder %s43, %s44
      %p56 = scmp.eq.s32.totalorder %s27, 1
      %p57 = por %p55, %p56
      %p59 = scmp.ne.s32.totalorder %s44, %s58
      %p60 = scmp.eq.s32.totalorder %s27, 0
      %p61 = por %p59, %p60
      %s63 = sadd.s32 %s62, 1
      %p66 = scmp.eq.s32.totalorder %s21, 1
      %p67 = scmp.ne.s32.totalorder %s62, %s64
      %p68 = scmp.eq.s32.totalorder %s21, 0
      %p69 = por %p67, %p68
      %p70 = scmp.ne.s32.totalorder %s62, %s64
      %p71 = scmp.eq.s32.totalorder %s26, 1
      %p72 = por %p70, %p71
      %p73 = scmp.ne.s32.totalorder %s64, %s65
      %p74 = scmp.eq.s32.totalorder %s26, 0
      %p75 = por %p73, %p74
      %p76 = scmp.ne.s32.totalorder %s64, %s65
      %p77 = scmp.eq.s32.totalorder %s27, 1
      %p78 = por %p76, %p77
      %p80 = scmp.ne.s32.totalorder %s65, %s79
      %p81 = scmp.eq.s32.totalorder %s27, 0
      %p82 = por %p80, %p81
      %s83 = ssub.s32 %s28, %s40
      %p84 = scmp.eq.s32.totalorder %s83, 0
      %s86 = sadd.s32 %s85, 1
      %s87 = scalar_select %p84, %s85, %s86
      %p90 = pneg %p84
      %p91 = scmp.eq.s32.totalorder %s21, 1
      %p92 = por %p90, %p91
      %p93 = scmp.ne.s32.totalorder %s85, %s88
      %p94 = scmp.eq.s32.totalorder %s21, 0
      %p95 = por %p93, %p94
      %p96 = scmp.ne.s32.totalorder %s85, %s88
      %p97 = scmp.eq.s32.totalorder %s26, 1
      %p98 = por %p96, %p97
      %p99 = scmp.ne.s32.totalorder %s88, %s89
      %p100 = scmp.eq.s32.totalorder %s26, 0
      %p101 = por %p99, %p100
      %p102 = scmp.ne.s32.totalorder %s88, %s89
      %p103 = scmp.eq.s32.totalorder %s27, 1
      %p104 = por %p102, %p103
      %p106 = scmp.ne.s32.totalorder %s89, %s105
      %p107 = scmp.eq.s32.totalorder %s27, 0
      %p108 = por %p106, %p107
      %s109 = ssub.s32 %s28, %s40
      %p110 = scmp.eq.s32.totalorder %s109, 0
      %s112 = sadd.s32 %s111, 1
      %s113 = scalar_select %p110, %s111, %s112
      %p116 = pneg %p110
      %p117 = scmp.eq.s32.totalorder %s21, 1
      %p118 = por %p116, %p117
      %p119 = scmp.ne.s32.totalorder %s111, %s114
      %p120 = scmp.eq.s32.totalorder %s21, 0
      %p121 = por %p119, %p120
      %p122 = scmp.ne.s32.totalorder %s111, %s114
      %p123 = scmp.eq.s32.totalorder %s26, 1
      %p124 = por %p122, %p123
      %p125 = scmp.ne.s32.totalorder %s114, %s115
      %p126 = scmp.eq.s32.totalorder %s26, 0
      %p127 = por %p125, %p126
      %p128 = scmp.ne.s32.totalorder %s114, %s115
      %p129 = scmp.eq.s32.totalorder %s27, 1
      %p130 = por %p128, %p129
      %p132 = scmp.ne.s32.totalorder %s115, %s131
      %p133 = scmp.eq.s32.totalorder %s27, 0
      %p134 = por %p132, %p133
      %s135 = ssub.s32 %s29, %s36
      %s136 = ssub.s32 %s28, %s40
      %s137 = sor.u32 %s135, %s136
      %p138 = scmp.eq.s32.totalorder %s137, 0
      %s140 = sadd.s32 %s139, 1
      %s141 = scalar_select %p138, %s139, %s140
      %p144 = pneg %p138
      %p145 = scmp.eq.s32.totalorder %s21, 1
      %p146 = por %p144, %p145
      %p147 = scmp.ne.s32.totalorder %s139, %s142
      %p148 = scmp.eq.s32.totalorder %s21, 0
      %p149 = por %p147, %p148
      %p150 = scmp.ne.s32.totalorder %s139, %s142
      %p151 = scmp.eq.s32.totalorder %s26, 1
      %p152 = por %p150, %p151
      %p153 = scmp.ne.s32.totalorder %s142, %s143
      %p154 = scmp.eq.s32.totalorder %s26, 0
      %p155 = por %p153, %p154
      %p156 = scmp.ne.s32.totalorder %s142, %s143
      %p157 = scmp.eq.s32.totalorder %s27, 1
      %p158 = por %p156, %p157
      %p160 = scmp.ne.s32.totalorder %s143, %s159
      %p161 = scmp.eq.s32.totalorder %s27, 0
      %p162 = por %p160, %p161
      %s163 = ssub.s32 %s29, %s36
      %s164 = ssub.s32 %s28, %s40
      %s165 = sor.u32 %s163, %s164
      %p166 = scmp.eq.s32.totalorder %s165, 0
      %s168 = sadd.s32 %s167, 1
      %s169 = scalar_select %p166, %s167, %s168
      %p172 = pneg %p166
      %p173 = scmp.eq.s32.totalorder %s21, 1
      %p174 = por %p172, %p173
      %p175 = scmp.ne.s32.totalorder %s167, %s170
      %p176 = scmp.eq.s32.totalorder %s21, 0
      %p177 = por %p175, %p176
      %p178 = scmp.ne.s32.totalorder %s167, %s170
      %p179 = scmp.eq.s32.totalorder %s26, 1
      %p180 = por %p178, %p179
      %p181 = scmp.ne.s32.totalorder %s170, %s171
      %p182 = scmp.eq.s32.totalorder %s26, 0
      %p183 = por %p181, %p182
      %p184 = scmp.ne.s32.totalorder %s170, %s171
      %p185 = scmp.eq.s32.totalorder %s27, 1
      %p186 = por %p184, %p185
      %p188 = scmp.ne.s32.totalorder %s171, %s187
      %p189 = scmp.eq.s32.totalorder %s27, 0
      %p190 = por %p188, %p189
      %p191 = scmp.le.s32.totalorder 1, %s21
      %p192 = scmp.lt.s32.totalorder %s21, 3
      %p193 = pnand %p191, %p192
      %p194 = pneg %p193
      // Predicated region
      $region9: #{tpu_custom_call.1} parent=5 // pred_check
        _
      $region10: #{tpu_custom_call.1} parent=5 // pred_check_branch
        %196 = sbr.rel (%p193) target = $region12
      $region11: #{tpu_custom_call.1} parent=5 // pred_region
        %s197 = ssub.s32 %s21, 1
        // Predicated region
        $region13: #{tpu_custom_call.1} parent=11 // pred_check
          %p198 = pneg %p54
        $region14: #{tpu_custom_call.1} parent=11 // pred_check_branch
          %200 = sbr.rel (%p198) target = $region16
        $region15: #{tpu_custom_call.1} parent=11 // pred_region
          %s202 = ssub.s32 128, 128
          %203 = vsyncadd [#allocation3], %s202
          %s204 = sshll.u32 [#allocation2], 4
          %s205 = int_to_ptr.vmem [resolvable:$true] %s204
          %210 = dma.hbm_to_vmem [thread:$0]  %s0, 128, %s205, [#allocation3], 16, 16, 1
        $region16: #{tpu_custom_call.1} parent=11 // pred_fallthru
          _
        // Predicated region
        $region17: #{tpu_custom_call.1} parent=11 // pred_check
          %p211 = pneg %p75
        $region18: #{tpu_custom_call.1} parent=11 // pred_check_branch
          %213 = sbr.rel (%p211) target = $region20
        $region19: #{tpu_custom_call.1} parent=11 // pred_region
          %s215 = ssub.s32 128, 128
          %216 = vsyncadd [#allocation6], %s215
          %s217 = sshll.u32 [#allocation5], 4
          %s218 = int_to_ptr.vmem [resolvable:$true] %s217
          %223 = dma.hbm_to_vmem [thread:$0]  %s1, 128, %s218, [#allocation6], 16, 16, 1
        $region20: #{tpu_custom_call.1} parent=11 // pred_fallthru
          _
        // Predicated region
        $region21: #{tpu_custom_call.1} parent=11 // pred_check
          %p224 = pneg %p101
        $region22: #{tpu_custom_call.1} parent=11 // pred_check_branch
          %226 = sbr.rel (%p224) target = $region24
        $region23: #{tpu_custom_call.1} parent=11 // pred_region
          %s227 = smul.u32 2, %s30
          %s229 = ssub.s32 256, 256
          %230 = vsyncadd [#allocation6], %s229
          %s231 = smul.addr %s227, 128
          %s232 = scalar_lea.hbm %s2, %s231
          %s233 = sshll.u32 [#allocation7], 4
          %s234 = int_to_ptr.vmem [resolvable:$true] %s233
          %239 = dma.hbm_to_vmem [thread:$0]  %s232, 256, %s234, [#allocation6], 128, 128, 8
        $region24: #{tpu_custom_call.1} parent=11 // pred_fallthru
          _
        // Predicated region
        $region25: #{tpu_custom_call.1} parent=11 // pred_check
          %p240 = pneg %p127
        $region26: #{tpu_custom_call.1} parent=11 // pred_check_branch
          %242 = sbr.rel (%p240) target = $region28
        $region27: #{tpu_custom_call.1} parent=11 // pred_region
          %s243 = smul.u32 2, %s30
          %s245 = ssub.s32 256, 256
          %246 = vsyncadd [#allocation9], %s245
          %s247 = smul.addr %s243, 128
          %s248 = scalar_lea.hbm %s3, %s247
          %s249 = sshll.u32 [#allocation8], 4
          %s250 = int_to_ptr.vmem [resolvable:$true] %s249
          %255 = dma.hbm_to_vmem [thread:$0]  %s248, 256, %s250, [#allocation9], 128, 128, 8
        $region28: #{tpu_custom_call.1} parent=11 // pred_fallthru
          _
      $region12: #{tpu_custom_call.1} parent=5 // pred_fallthru
        _
      %p256 = scmp.lt.s32.totalorder %s21, 2
      // Predicated region
      $region29: #{tpu_custom_call.1} parent=5 // pred_check
        %p257 = pneg %p256
      $region30: #{tpu_custom_call.1} parent=5 // pred_check_branch
        %259 = sbr.rel (%p257) target = $region32
      $region31: #{tpu_custom_call.1} parent=5 // pred_region
        _
      $region32: #{tpu_custom_call.1} parent=5 // pred_fallthru
        _
      %p260 = scmp.le.s32.totalorder 1, %s21
      %p261 = scmp.lt.s32.totalorder %s21, 3
      %p262 = pnand %p260, %p261
      %p263 = pneg %p262
      // Predicated region
      $region33: #{tpu_custom_call.1} parent=5 // pred_check
        _
      $region34: #{tpu_custom_call.1} parent=5 // pred_check_branch
        %265 = sbr.rel (%p262) target = $region36
      $region35: #{tpu_custom_call.1} parent=5 // pred_region
        %s266 = ssub.s32 %s21, 1
        // Predicated region
        $region37: #{tpu_custom_call.1} parent=35 // pred_check
          %p267 = pneg %p54
        $region38: #{tpu_custom_call.1} parent=35 // pred_check_branch
          %269 = sbr.rel (%p267) target = $region40
        $region39: #{tpu_custom_call.1} parent=35 // pred_region
          %270 = dma.done [#allocation3], 128
        $region40: #{tpu_custom_call.1} parent=35 // pred_fallthru
          _
        // Predicated region
        $region41: #{tpu_custom_call.1} parent=35 // pred_check
          %p271 = pneg %p75
        $region42: #{tpu_custom_call.1} parent=35 // pred_check_branch
          %273 = sbr.rel (%p271) target = $region44
        $region43: #{tpu_custom_call.1} parent=35 // pred_region
          %274 = dma.done [#allocation6], 128
        $region44: #{tpu_custom_call.1} parent=35 // pred_fallthru
          _
        // Predicated region
        $region45: #{tpu_custom_call.1} parent=35 // pred_check
          %p275 = pneg %p101
        $region46: #{tpu_custom_call.1} parent=35 // pred_check_branch
          %277 = sbr.rel (%p275) target = $region48
        $region47: #{tpu_custom_call.1} parent=35 // pred_region
          %278 = dma.done [#allocation6], 256
        $region48: #{tpu_custom_call.1} parent=35 // pred_fallthru
          _
        // Predicated region
        $region49: #{tpu_custom_call.1} parent=35 // pred_check
          %p279 = pneg %p127
        $region50: #{tpu_custom_call.1} parent=35 // pred_check_branch
          %281 = sbr.rel (%p279) target = $region52
        $region51: #{tpu_custom_call.1} parent=35 // pred_region
          %282 = dma.done [#allocation9], 256
        $region52: #{tpu_custom_call.1} parent=35 // pred_fallthru
          _
        %p283 = pneg %p54
        %p284 = pneg %p51
        %p285 = pneg %p75
        %p286 = pneg %p72
        %p287 = pneg %p101
        %p288 = pneg %p98
        %p289 = pneg %p127
        %p290 = pneg %p124
        %p291 = pneg %p155
        %p292 = pneg %p152
        %s293 = sand.u32 %s142, 1
        %s294 = scalar_lea.sflag [#allocation4], %s293
        %s295 = sand.u32 %s142, 1
        %s296 = smul.addr %s295, 64
        %s297 = scalar_lea.vmem [#allocation10], %s296
        %p298 = pneg %p183
        %p299 = pneg %p180
        %s300 = sand.u32 %s170, 1
        %s301 = scalar_lea.sflag [#allocation12], %s300
        %s302 = sand.u32 %s170, 1
        %s303 = smul.addr %s302, 64
        %s304 = scalar_lea.vmem [#allocation11], %s303
        %s305 = smul.u32 2, %s30
        %s306 = smul.u32 2, %s30
        %s307 = smul.u32 4, %s31
        %s308 = smul.u32 2, %s30
        %s309 = smul.u32 4, %s31
        %s310 = smul.u32 2, %s30
        %s311 = smul.u32 %s31, 4
        %v312 = vld [vmem:[#allocation7] sm:$0xff]
        %v313 = vld [vmem:[#allocation7 + $0x8] sm:$0xff]
        %v314 = vld [vmem:[#allocation8] sm:$0xff]
        %v315 = vld [vmem:[#allocation8 + $0x8] sm:$0xff]
        %s316 = scalar_lea.vmem [#allocation2], %s311
        %v317 = vld [vmem:[%s316] sm:$0x1]
        %v319 = vlaneseq
        %v320 = vshrl.u32 %v319, 7
        %v321 = vsub.s32 0, %v320
        %v322 = vrot.slane %v317, %v321
        %v324 = vadd.f32 %v312, %v322
        %v325 = vadd.f32 %v313, %v322
        %326 = vst [vmem:[%s297] sm:$0xff] %v324
        %327 = vst [vmem:[%s297 + $0x8] sm:$0xff] %v325
        %s328 = scalar_lea.vmem [#allocation5], %s311
        %v329 = vld [vmem:[%s328] sm:$0x1]
        %v331 = vlaneseq
        %v332 = vshrl.u32 %v331, 7
        %v333 = vsub.s32 0, %v332
        %v334 = vrot.slane %v329, %v333
        %v336 = vadd.f32 %v314, %v334
        %v337 = vadd.f32 %v315, %v334
        %338 = vst [vmem:[%s304] sm:$0xff] %v336
        %339 = vst [vmem:[%s304 + $0x8] sm:$0xff] %v337
        %s340 = sadd.s32 %s311, 1
        %s341 = scalar_lea.vmem [#allocation2], %s340
        %v342 = vld [vmem:[%s341] sm:$0x1]
        %v344 = vlaneseq
        %v345 = vshrl.u32 %v344, 7
        %v346 = vsub.s32 0, %v345
        %v347 = vrot.slane %v342, %v346
        %v349 = vadd.f32 %v312, %v347
        %v350 = vadd.f32 %v313, %v347
        %s351 = scalar_lea.vmem %s297, 16 [#allocation10]
        %352 = vst [vmem:[%s351] sm:$0xff] %v349
        %353 = vst [vmem:[%s351 + $0x8] sm:$0xff] %v350
        %s354 = scalar_lea.vmem [#allocation5], %s340
        %v355 = vld [vmem:[%s354] sm:$0x1]
        %v357 = vlaneseq
        %v358 = vshrl.u32 %v357, 7
        %v359 = vsub.s32 0, %v358
        %v360 = vrot.slane %v355, %v359
        %v362 = vadd.f32 %v314, %v360
        %v363 = vadd.f32 %v315, %v360
        %s364 = scalar_lea.vmem %s304, 16 [#allocation11]
        %365 = vst [vmem:[%s364] sm:$0xff] %v362
        %366 = vst [vmem:[%s364 + $0x8] sm:$0xff] %v363
        %s367 = sadd.s32 %s311, 2
        %s368 = scalar_lea.vmem [#allocation2], %s367
        %v369 = vld [vmem:[%s368] sm:$0x1]
        %v371 = vlaneseq
        %v372 = vshrl.u32 %v371, 7
        %v373 = vsub.s32 0, %v372
        %v374 = vrot.slane %v369, %v373
        %v376 = vadd.f32 %v312, %v374
        %v377 = vadd.f32 %v313, %v374
        %s378 = scalar_lea.vmem %s297, 32 [#allocation10]
        %379 = vst [vmem:[%s378] sm:$0xff] %v376
        %380 = vst [vmem:[%s378 + $0x8] sm:$0xff] %v377
        %s381 = scalar_lea.vmem [#allocation5], %s367
        %v382 = vld [vmem:[%s381] sm:$0x1]
        %v384 = vlaneseq
        %v385 = vshrl.u32 %v384, 7
        %v386 = vsub.s32 0, %v385
        %v387 = vrot.slane %v382, %v386
        %v389 = vadd.f32 %v314, %v387
        %v390 = vadd.f32 %v315, %v387
        %s391 = scalar_lea.vmem %s304, 32 [#allocation11]
        %392 = vst [vmem:[%s391] sm:$0xff] %v389
        %393 = vst [vmem:[%s391 + $0x8] sm:$0xff] %v390
        %s394 = sadd.s32 %s311, 3
        %s395 = scalar_lea.vmem [#allocation2], %s394
        %v396 = vld [vmem:[%s395] sm:$0x1]
        %v398 = vlaneseq
        %v399 = vshrl.u32 %v398, 7
        %v400 = vsub.s32 0, %v399
        %v401 = vrot.slane %v396, %v400
        %v403 = vadd.f32 %v312, %v401
        %v404 = vadd.f32 %v313, %v401
        %s405 = scalar_lea.vmem %s297, 48 [#allocation10]
        %406 = vst [vmem:[%s405] sm:$0xff] %v403
        %407 = vst [vmem:[%s405 + $0x8] sm:$0xff] %v404
        %s408 = scalar_lea.vmem [#allocation5], %s394
        %v409 = vld [vmem:[%s408] sm:$0x1]
        %v411 = vlaneseq
        %v412 = vshrl.u32 %v411, 7
        %v413 = vsub.s32 0, %v412
        %v414 = vrot.slane %v409, %v413
        %v416 = vadd.f32 %v314, %v414
        %v417 = vadd.f32 %v315, %v414
        %s418 = scalar_lea.vmem %s304, 48 [#allocation11]
        %419 = vst [vmem:[%s418] sm:$0xff] %v416
        %420 = vst [vmem:[%s418 + $0x8] sm:$0xff] %v417
        %s421 = sand.u32 %s142, 1
        %s422 = scalar_lea.sflag [#allocation4], %s421
        %s423 = sand.u32 %s142, 1
        %s424 = smul.addr %s423, 64
        %s425 = scalar_lea.vmem [#allocation10], %s424
        %s426 = sand.u32 %s170, 1
        %s427 = scalar_lea.sflag [#allocation12], %s426
        %s428 = sand.u32 %s170, 1
        %s429 = smul.addr %s428, 64
        %s430 = scalar_lea.vmem [#allocation11], %s429
        // Predicated region
        $region53: #{tpu_custom_call.1} parent=35 // pred_check
          %p431 = pneg %p152
        $region54: #{tpu_custom_call.1} parent=35 // pred_check_branch
          %433 = sbr.rel (%p431) target = $region56
        $region55: #{tpu_custom_call.1} parent=35 // pred_region
          %s434 = smul.u32 4, %s31
          %s435 = smul.u32 2, %s30
          %s437 = ssub.s32 1024, 1024
          %438 = vsyncadd %s422, %s437
          %s439 = smul.addr %s434, 2
          %s440 = sadd.s32 %s435, %s439
          %s441 = smul.addr %s440, 128
          %s442 = scalar_lea.hbm %s4, %s441
          %s443 = sshll.u32 %s425, 4
          %s444 = int_to_ptr.vmem [resolvable:$true] %s443
          %449 = dma.vmem_to_hbm [thread:$0]  %s444, 1024, %s442, %s422, 128, 128, 8
        $region56: #{tpu_custom_call.1} parent=35 // pred_fallthru
          _
        // Predicated region
        $region57: #{tpu_custom_call.1} parent=35 // pred_check
          %p450 = pneg %p180
        $region58: #{tpu_custom_call.1} parent=35 // pred_check_branch
          %452 = sbr.rel (%p450) target = $region60
        $region59: #{tpu_custom_call.1} parent=35 // pred_region
          %s453 = smul.u32 4, %s31
          %s454 = smul.u32 2, %s30
          %s456 = ssub.s32 1024, 1024
          %457 = vsyncadd %s427, %s456
          %s458 = smul.addr %s453, 2
          %s459 = sadd.s32 %s454, %s458
          %s460 = smul.addr %s459, 128
          %s461 = scalar_lea.hbm %s5, %s460
          %s462 = sshll.u32 %s430, 4
          %s463 = int_to_ptr.vmem [resolvable:$true] %s462
          %468 = dma.vmem_to_hbm [thread:$0]  %s463, 1024, %s461, %s427, 128, 128, 8
        $region60: #{tpu_custom_call.1} parent=35 // pred_fallthru
          _
      $region36: #{tpu_custom_call.1} parent=5 // pred_fallthru
        _
      %p469 = scmp.le.s32.totalorder 2, %s21
      // Predicated region
      $region61: #{tpu_custom_call.1} parent=5 // pred_check
        %p470 = pneg %p469
      $region62: #{tpu_custom_call.1} parent=5 // pred_check_branch
        %472 = sbr.rel (%p470) target = $region64
      $region63: #{tpu_custom_call.1} parent=5 // pred_region
        %s473 = ssub.s32 %s21, 2
        // Predicated region
        $region65: #{tpu_custom_call.1} parent=63 // pred_check
          %p474 = pneg %p158
        $region66: #{tpu_custom_call.1} parent=63 // pred_check_branch
          %476 = sbr.rel (%p474) target = $region68
        $region67: #{tpu_custom_call.1} parent=63 // pred_region
          %s477 = sand.u32 %s143, 1
          %s478 = scalar_lea.sflag [#allocation4], %s477
          %s479 = sand.u32 %s143, 1
          %s480 = smul.addr %s479, 64
          %s481 = scalar_lea.vmem [#allocation10], %s480
          %482 = dma.done %s478, 1024
        $region68: #{tpu_custom_call.1} parent=63 // pred_fallthru
          _
        // Predicated region
        $region69: #{tpu_custom_call.1} parent=63 // pred_check
          %p483 = pneg %p186
        $region70: #{tpu_custom_call.1} parent=63 // pred_check_branch
          %485 = sbr.rel (%p483) target = $region72
        $region71: #{tpu_custom_call.1} parent=63 // pred_region
          %s486 = sand.u32 %s171, 1
          %s487 = scalar_lea.sflag [#allocation12], %s486
          %s488 = sand.u32 %s171, 1
          %s489 = smul.addr %s488, 64
          %s490 = scalar_lea.vmem [#allocation11], %s489
          %491 = dma.done %s487, 1024
        $region72: #{tpu_custom_call.1} parent=63 // pred_fallthru
          _
      $region64: #{tpu_custom_call.1} parent=5 // pred_fallthru
        _
    $region6: #{tpu_custom_call.1} parent=1 // loop_footer
      %s25 = sadd.s32 1, %s21
    $region7: #{tpu_custom_call.1} parent=1 // loop_footer_branch
      %20 = sbr.rel target = $region3
    $region8: #{tpu_custom_call.1} parent=1 // loop_exit
      _
    %492 = vsyncpa [#allocation3], 1
    %s493 = scalar_lea.sflag [#allocation3], 1
    %494 = vsyncpa %s493, 1
    %495 = vsyncpa [#allocation6], 1
    %496 = vsyncpa [#allocation9], 1
    %497 = vsyncpa [#allocation4], 1
    %s498 = scalar_lea.sflag [#allocation4], 1
    %499 = vsyncpa %s498, 1
    %500 = vsyncpa [#allocation12], 1
    %s501 = scalar_lea.sflag [#allocation12], 1
    %502 = vsyncpa %s501, 1

</llo_original>
